<compile_context>
chip_gen: v7x
topology: tpu7x:2x2x1
jax: 0.10.0
libtpu: 0.0.40
codegen_flags: <defaults>
</compile_context>

<pallas_src>
import functools

import jax
import jax.numpy as jnp
from jax.experimental import pallas as pl
from jax.experimental.pallas import tpu as pltpu


def _sepconv_kernel(x_ref, w_ref, m_ref, out_ref, *, ks, pad, W, L):
    """Fused depthwise + pointwise conv for a chunk of B images.

    x_ref  : (B, Cin, L)   flat-spatial input, L = H*W on the lane axis
    w_ref  : (Cout, K)     effective weights, K = ks*ks*Cin, rows = (tap, chan)
    m_ref  : (K, L)        0/1 tap-validity mask ('same' zero padding)
    out_ref: (B, Cout, L)  lane-dense output
    """
    B = x_ref.shape[0]
    w = w_ref[...].astype(jnp.float32)              # (Cout, K)
    m = m_ref[...].astype(jnp.float32)              # (K, L)

    cols = []
    for b in range(B):                              # static unroll (B is tiny)
        xb = x_ref[b].astype(jnp.float32)           # (Cin, L)
        taps = []
        for kh in range(ks):
            for kw in range(ks):
                d = (kh - pad) * W + (kw - pad)     # flat shift of this tap
                if d == 0:
                    taps.append(xb)
                else:
                    # tap[:, l] = x[:, (l + d) mod L]; wrap-around positions
                    # are exactly the padding positions and get zeroed by m.
                    taps.append(pltpu.roll(xb, shift=(-d) % L, axis=1))
        cols.append(jnp.concatenate(taps, axis=0) * m)           # (K, L)

    T = cols[0] if B == 1 else jnp.concatenate(cols, axis=1)     # (K, B*L)
    y = jnp.dot(w, T, preferred_element_type=jnp.float32)        # (Cout, B*L)

    for b in range(B):
        out_ref[b] = y[:, b * L:(b + 1) * L].astype(out_ref.dtype)


def separable_conv2d(x_nchw, dw_weight, pw_weight, *, kernel_size, padding,
                     grid_chunks=None):
    """Fused SeparableConv2d forward (stride=1, 'same' padding, bias=False).

    x_nchw:    (N, Cin, H, W)
    dw_weight: (Cin, 1, ks, ks)   PyTorch depthwise layout
    pw_weight: (Cout, Cin, 1, 1)  PyTorch pointwise layout
    """
    N, Cin, H, W = x_nchw.shape
    ks, pad = kernel_size, padding
    Cout = pw_weight.shape[0]
    if 2 * pad != ks - 1:
        # TODO(synk): general padding / stride>1 / bias=True change the output
        # shape or add a vector add; the module's used configs (ks=1,pad=0 and
        # ks=3,pad=1, stride=1, bias=False) are covered here.
        raise NotImplementedError(
            "kernel assumes stride=1 and 2*padding == kernel_size - 1")

    L = H * W
    K = ks * ks * Cin

    if grid_chunks is None:
        # 2 chunks -> both v7x TensorCores get work; on single-TC v5e/v6e pass
        # grid_chunks=1 to fold the whole batch into one grid step.
        grid_chunks = 2 if (N >= 2 and N % 2 == 0) else 1
    if N % grid_chunks != 0:
        raise ValueError("grid_chunks must divide the batch size")
    B = N // grid_chunks

    # ---- tiny one-time precomputation outside the kernel -------------------
    dw = dw_weight.reshape(Cin, ks * ks).astype(jnp.float32)     # dw[c, t]
    pw = pw_weight.reshape(Cout, Cin).astype(jnp.float32)        # pw[o, c]
    # W_eff[o, t*Cin + c] = pw[o, c] * dw[c, t]
    w_eff = (pw[:, None, :] * jnp.transpose(dw)[None, :, :]).reshape(Cout, K)

    # Tap-validity masks: row t*Cin + c is 1 where output pixel l has its
    # (kh, kw) neighbour inside the image; 0 where 'same' zero padding applies.
    hh = jnp.arange(L, dtype=jnp.int32) // W
    ww = jnp.arange(L, dtype=jnp.int32) % W
    rows = []
    for kh in range(ks):
        for kw in range(ks):
            rh = hh + (kh - pad)
            rw = ww + (kw - pad)
            rows.append(((rh >= 0) & (rh < H) & (rw >= 0) & (rw < W)
                         ).astype(jnp.float32))
    mask = jnp.repeat(jnp.stack(rows, axis=0), Cin, axis=0)      # (K, L)

    # Free contiguous reshape: flatten spatial, keep NCHW ordering.
    x_flat = x_nchw.reshape(N, Cin, L)

    kernel = functools.partial(_sepconv_kernel, ks=ks, pad=pad, W=W, L=L)

    out_flat = pl.pallas_call(
        kernel,
        out_shape=jax.ShapeDtypeStruct((N, Cout, L), x_nchw.dtype),
        grid_spec=pltpu.PrefetchScalarGridSpec(
            num_scalar_prefetch=0,
            grid=(grid_chunks,),
            in_specs=[
                pl.BlockSpec((B, Cin, L), lambda i: (i, 0, 0)),
                pl.BlockSpec((Cout, K), lambda i: (0, 0)),   # constant block
                pl.BlockSpec((K, L), lambda i: (0, 0)),      # constant block
            ],
            out_specs=pl.BlockSpec((B, Cout, L), lambda i: (i, 0, 0)),
        ),
        # VMEM footprint here is ~100 KB; when scaling (large Cin / H*W) add an
        # L- or channel-tiling grid axis and size blocks against v7x's 64 MiB.
        compiler_params=pltpu.CompilerParams(
            dimension_semantics=("parallel",)),
    )(x_flat, w_eff, mask)

    # Free reshape back to NCHW (no transpose needed).
    return out_flat.reshape(N, Cout, H, W)


def _reference(x_nchw, dw_weight, pw_weight, *, padding):
    """Pure-JAX reference using lax convolutions (NCHW, like PyTorch)."""
    cin = x_nchw.shape[1]
    y = jax.lax.conv_general_dilated(
        x_nchw.astype(jnp.float32), dw_weight.astype(jnp.float32),
        window_strides=(1, 1), padding=[(padding, padding), (padding, padding)],
        dimension_numbers=("NCHW", "OIHW", "NCHW"),
        feature_group_count=cin)
    y = jax.lax.conv_general_dilated(
        y, pw_weight.astype(jnp.float32),
        window_strides=(1, 1), padding="VALID",
        dimension_numbers=("NCHW", "OIHW", "NCHW"))
    return y.astype(x_nchw.dtype)


if __name__ == "__main__":
    # SeparableConv2d(4, 8, kernel_size=3, stride=1, padding=1, bias=False)
    N, Cin, H, W = 2, 4, 16, 16
    Cout, ks, pad = 8, 3, 1

    key = jax.random.PRNGKey(0)
    kx, kd, kp = jax.random.split(key, 3)
    x = jax.random.normal(kx, (N, Cin, H, W), dtype=jnp.float32)
    dw_weight = jax.random.normal(kd, (Cin, 1, ks, ks), dtype=jnp.float32) * 0.1
    pw_weight = jax.random.normal(kp, (Cout, Cin, 1, 1), dtype=jnp.float32) * 0.1

    ref = _reference(x, dw_weight, pw_weight, padding=pad)

    # Default: 2 batch chunks ("parallel") -> one chunk per v7x TensorCore.
    out = jax.block_until_ready(
        separable_conv2d(x, dw_weight, pw_weight, kernel_size=ks, padding=pad))
    assert out.shape == (N, Cout, H, W)
    assert jnp.allclose(out, ref, atol=1e-4, rtol=1e-4), "mismatch (2 chunks)"

    # Single-step variant: whole batch in one grid step (preferred on v5e/v6e).
    out1 = jax.block_until_ready(
        separable_conv2d(x, dw_weight, pw_weight, kernel_size=ks, padding=pad,
                         grid_chunks=1))
    assert jnp.allclose(out1, ref, atol=1e-4, rtol=1e-4), "mismatch (1 chunk)"

    # Module's default constructor config (kernel_size=1, padding=0) goes
    # through the same fused path (single tap, no rolls).
    kd1, kp1 = jax.random.split(kd)
    dw1 = jax.random.normal(kd1, (Cin, 1, 1, 1), dtype=jnp.float32) * 0.1
    pw1 = jax.random.normal(kp1, (Cout, Cin, 1, 1), dtype=jnp.float32) * 0.1
    out_k1 = jax.block_until_ready(
        separable_conv2d(x, dw1, pw1, kernel_size=1, padding=0))
    ref_k1 = _reference(x, dw1, pw1, padding=0)
    assert jnp.allclose(out_k1, ref_k1, atol=1e-4, rtol=1e-4), "mismatch (1x1)"

    print("KERNEL_OK")
</pallas_src>

<mosaic_0001>
module attributes {stable_mosaic.version = 11 : i64} {
  func.func @_sepconv_kernel(%arg0: i32, %arg1: memref<1x4x256xf32, #tpu.memory_space<vmem>>, %arg2: memref<8x36xf32, #tpu.memory_space<vmem>>, %arg3: memref<36x256xf32, #tpu.memory_space<vmem>>, %arg4: memref<1x8x256xf32, #tpu.memory_space<vmem>>) attributes {dimension_semantics = [#tpu.dimension_semantics<parallel>], iteration_bounds = array<i64: 2>, scalar_prefetch = 0 : i64, scratch_operands = 0 : i64, tpu.core_type = #tpu.core_type<tc>, window_params = [{transform_indices = @transform_0, window_bounds = array<i64: 1, 4, 256>}, {pipeline_mode = #tpu.pipeline_mode<synchronous>, transform_indices = @transform_1, window_bounds = array<i64: 8, 36>}, {pipeline_mode = #tpu.pipeline_mode<synchronous>, transform_indices = @transform_2, window_bounds = array<i64: 36, 256>}, {transform_indices = @transform_3, window_bounds = array<i64: 1, 8, 256>}]} {
    %c0 = arith.constant 0 : index
    %c0_0 = arith.constant 0 : index
    %0 = vector.load %arg2[%c0, %c0_0] : memref<8x36xf32, #tpu.memory_space<vmem>>, vector<8x36xf32>
    %c0_1 = arith.constant 0 : index
    %c0_2 = arith.constant 0 : index
    %1 = vector.load %arg3[%c0_1, %c0_2] : memref<36x256xf32, #tpu.memory_space<vmem>>, vector<36x256xf32>
    %c0_3 = arith.constant 0 : index
    %c0_4 = arith.constant 0 : index
    %c0_5 = arith.constant 0 : index
    %2 = vector.load %arg1[%c0_3, %c0_4, %c0_5] : memref<1x4x256xf32, #tpu.memory_space<vmem>>, vector<1x4x256xf32>
    %3 = vector.shape_cast %2 : vector<1x4x256xf32> to vector<4x256xf32>
    %c17_i32 = arith.constant 17 : i32
    %4 = tpu.dynamic_rotate %3 by %c17_i32 dim 1 : vector<4x256xf32>, i32 -> vector<4x256xf32>
    %c16_i32 = arith.constant 16 : i32
    %5 = tpu.dynamic_rotate %3 by %c16_i32 dim 1 : vector<4x256xf32>, i32 -> vector<4x256xf32>
    %c15_i32 = arith.constant 15 : i32
    %6 = tpu.dynamic_rotate %3 by %c15_i32 dim 1 : vector<4x256xf32>, i32 -> vector<4x256xf32>
    %c1_i32 = arith.constant 1 : i32
    %7 = tpu.dynamic_rotate %3 by %c1_i32 dim 1 : vector<4x256xf32>, i32 -> vector<4x256xf32>
    %c255_i32 = arith.constant 255 : i32
    %8 = tpu.dynamic_rotate %3 by %c255_i32 dim 1 : vector<4x256xf32>, i32 -> vector<4x256xf32>
    %c241_i32 = arith.constant 241 : i32
    %9 = tpu.dynamic_rotate %3 by %c241_i32 dim 1 : vector<4x256xf32>, i32 -> vector<4x256xf32>
    %c240_i32 = arith.constant 240 : i32
    %10 = tpu.dynamic_rotate %3 by %c240_i32 dim 1 : vector<4x256xf32>, i32 -> vector<4x256xf32>
    %c239_i32 = arith.constant 239 : i32
    %11 = tpu.dynamic_rotate %3 by %c239_i32 dim 1 : vector<4x256xf32>, i32 -> vector<4x256xf32>
    %12 = tpu.concatenate %4, %5, %6, %7, %3, %8, %9, %10, %11 in 0 : vector<4x256xf32>, vector<4x256xf32>, vector<4x256xf32>, vector<4x256xf32>, vector<4x256xf32>, vector<4x256xf32>, vector<4x256xf32>, vector<4x256xf32>, vector<4x256xf32> -> vector<36x256xf32>
    %13 = arith.mulf %12, %1 : vector<36x256xf32>
    %cst = arith.constant dense<0.000000e+00> : vector<8x256xf32>
    %14 = tpu.matmul %0, %13, %cst {dimension_numbers = #tpu.dot_dimension_numbers<[1], [0], [0], [1], [0, 0, 1, 1], [], []>} : vector<8x36xf32>, vector<36x256xf32>, vector<8x256xf32> -> vector<8x256xf32>
    %c0_6 = arith.constant 0 : index
    %c0_7 = arith.constant 0 : index
    %c0_8 = arith.constant 0 : index
    %15 = vector.load %arg4[%c0_6, %c0_7, %c0_8] : memref<1x8x256xf32, #tpu.memory_space<vmem>>, vector<1x8x256xf32>
    %16 = vector.shape_cast %15 : vector<1x8x256xf32> to vector<8x256xf32>
    %17 = vector.shape_cast %14 : vector<8x256xf32> to vector<1x8x256xf32>
    tpu.vector_store %arg4[%c0_6, %c0_7, %c0_8], %17 {strides = array<i32>} : memref<1x8x256xf32, #tpu.memory_space<vmem>>, vector<1x8x256xf32>,
    return
  }
  func.func @transform_0(%arg0: i32) -> (i32, i32, i32) {
    %c0_i32 = arith.constant 0 : i32
    %c0_i32_0 = arith.constant 0 : i32
    %c0_i32_1 = arith.constant 0 : i32
    return %arg0, %c0_i32, %c0_i32_0 : i32, i32, i32
  }
  func.func @transform_1(%arg0: i32) -> (i32, i32) {
    %c0_i32 = arith.constant 0 : i32
    %c0_i32_0 = arith.constant 0 : i32
    %c0_i32_1 = arith.constant 0 : i32
    return %c0_i32, %c0_i32_0 : i32, i32
  }
  func.func @transform_2(%arg0: i32) -> (i32, i32) {
    %c0_i32 = arith.constant 0 : i32
    %c0_i32_0 = arith.constant 0 : i32
    %c0_i32_1 = arith.constant 0 : i32
    return %c0_i32, %c0_i32_0 : i32, i32
  }
  func.func @transform_3(%arg0: i32) -> (i32, i32, i32) {
    %c0_i32 = arith.constant 0 : i32
    %c0_i32_0 = arith.constant 0 : i32
    %c0_i32_1 = arith.constant 0 : i32
    return %arg0, %c0_i32, %c0_i32_0 : i32, i32, i32
  }
}

</mosaic_0001>

<llo_original>
// kernel: tpu_custom_call.1
$region0: #{tpu_custom_call.1}
  #allocation0 [shape = 'u32[]', space=smem, size = 0x4, offset = 0x4, fixed_abs, tag = 'smem constant byte address 0x4 - core index']
  #allocation1 [shape = 'u32[144,128]{1,0:T(1,128)}', space=vmem, size = 0x12000, scoped, tag = 'internal scratch']
  %s0 = inlined_call_operand.hbm [shape: f32[2,4,256], index: 0, kind: input, shape index: {}]
  %s1 = inlined_call_operand.hbm [shape: f32[8,36], index: 1, kind: input, shape index: {}]
  %s2 = inlined_call_operand.hbm [shape: f32[36,256], index: 2, kind: input, shape index: {}]
  %s3 = inlined_call_operand.hbm [shape: f32[2,8,256], index: 3, kind: output, shape index: {}]
  %s4 = sld [smem:[#allocation0]]
  $region57: #{tpu_custom_call.1} parent=0
    _
  %s6 = ssub.s32 1, %s4
  %s7 = scalar_select 0, %s6, %s4
  $region1: #{tpu_custom_call.1} parent=0
    #allocation2 [shape = 'u8[8192]{0}', space=vmem, size = 0x2000, scoped, tag = 'input window, operand 0']
    #allocation3 [shape = 's32[2]{0}', space=sflag, size = 0x8, scoped, tag = 'scoped memory for tpu_custom_call.1']
    #allocation4 [shape = 's32[2]{0}', space=sflag, size = 0x8, scoped, tag = 'scoped memory for tpu_custom_call.1']
    #allocation5 [shape = 'u8[4096]{0}', space=vmem, size = 0x1000, scoped, tag = 'input window, operand 1, single buffered']
    #allocation6 [shape = 's32[1]{0}', space=sflag, size = 0x4, scoped, tag = 'scoped memory for tpu_custom_call.1']
    #allocation7 [shape = 'u8[40960]{0}', space=vmem, size = 0xa000, scoped, tag = 'input window, operand 2, single buffered']
    #allocation8 [shape = 'u8[16384]{0}', space=vmem, size = 0x4000, scoped, tag = 'output window, operand 0']
    %8 = vsyncpa [#allocation3], 0
    %s9 = scalar_lea.sflag [#allocation3], 1
    %10 = vsyncpa %s9, 0
    %11 = vsyncpa [#allocation6], 0
    %12 = vsyncpa [#allocation4], 0
    %s13 = scalar_lea.sflag [#allocation4], 1
    %14 = vsyncpa %s13, 0
    loop: start=0, step=1, limit=4
    $region2: #{tpu_custom_call.1} parent=1 // loop_pre_header
      _
    $region3: #{tpu_custom_call.1} parent=1 // loop_header
      %s16 = sphi 0, %s20
      %p17 = scmp.ge.s32.totalorder %s16, 4
      %s26 = sphi 0, %s28
      %s29 = sphi 0, %s26
      %s30 = sphi 0, %s29
      %s46 = sphi 0, %s30
      %s50 = sphi 0, %s50
      %s52 = sphi 0, %s50
      %s53 = sphi 0, %s52
      %s67 = sphi 0, %s53
      %s71 = sphi 0, %s71
      %s73 = sphi 0, %s71
      %s74 = sphi 0, %s73
      %s88 = sphi 0, %s74
      %s94 = sphi 0, %s96
      %s97 = sphi 0, %s94
      %s98 = sphi 0, %s97
      %s114 = sphi 0, %s98
    $region4: #{tpu_custom_call.1} parent=1 // loop_header_branch
      %19 = sbr.rel (%p17) target = $region8
    $region5: #{tpu_custom_call.1} parent=1 // loop_body
      %s21 = ssub.s32 %s16, 1
      %s22 = ssub.s32 %s16, 2
      %s23 = sadd.s32 %s16, 1
      %s24 = ssub.s32 %s16, %s23
      %p25 = scmp.eq.s32.totalorder %s24, 0
      %s27 = sadd.s32 %s26, 1
      %s28 = scalar_select %p25, %s26, %s27
      %p31 = pneg %p25
      %p32 = scmp.eq.s32.totalorder %s16, 1
      %p33 = por %p31, %p32
      %p34 = scmp.ne.s32.totalorder %s26, %s29
      %p35 = scmp.eq.s32.totalorder %s16, 0
      %p36 = por %p34, %p35
      %p37 = scmp.ne.s32.totalorder %s26, %s29
      %p38 = scmp.eq.s32.totalorder %s21, 1
      %p39 = por %p37, %p38
      %p40 = scmp.ne.s32.totalorder %s29, %s30
      %p41 = scmp.eq.s32.totalorder %s21, 0
      %p42 = por %p40, %p41
      %p43 = scmp.ne.s32.totalorder %s29, %s30
      %p44 = scmp.eq.s32.totalorder %s22, 1
      %p45 = por %p43, %p44
      %p47 = scmp.ne.s32.totalorder %s30, %s46
      %p48 = scmp.eq.s32.totalorder %s22, 0
      %p49 = por %p47, %p48
      %s51 = sadd.s32 %s50, 1
      %p54 = scmp.eq.s32.totalorder %s16, 1
      %p55 = scmp.ne.s32.totalorder %s50, %s52
      %p56 = scmp.eq.s32.totalorder %s16, 0
      %p57 = por %p55, %p56
      %p58 = scmp.ne.s32.totalorder %s50, %s52
      %p59 = scmp.eq.s32.totalorder %s21, 1
      %p60 = por %p58, %p59
      %p61 = scmp.ne.s32.totalorder %s52, %s53
      %p62 = scmp.eq.s32.totalorder %s21, 0
      %p63 = por %p61, %p62
      %p64 = scmp.ne.s32.totalorder %s52, %s53
      %p65 = scmp.eq.s32.totalorder %s22, 1
      %p66 = por %p64, %p65
      %p68 = scmp.ne.s32.totalorder %s53, %s67
      %p69 = scmp.eq.s32.totalorder %s22, 0
      %p70 = por %p68, %p69
      %s72 = sadd.s32 %s71, 1
      %p75 = scmp.eq.s32.totalorder %s16, 1
      %p76 = scmp.ne.s32.totalorder %s71, %s73
      %p77 = scmp.eq.s32.totalorder %s16, 0
      %p78 = por %p76, %p77
      %p79 = scmp.ne.s32.totalorder %s71, %s73
      %p80 = scmp.eq.s32.totalorder %s21, 1
      %p81 = por %p79, %p80
      %p82 = scmp.ne.s32.totalorder %s73, %s74
      %p83 = scmp.eq.s32.totalorder %s21, 0
      %p84 = por %p82, %p83
      %p85 = scmp.ne.s32.totalorder %s73, %s74
      %p86 = scmp.eq.s32.totalorder %s22, 1
      %p87 = por %p85, %p86
      %p89 = scmp.ne.s32.totalorder %s74, %s88
      %p90 = scmp.eq.s32.totalorder %s22, 0
      %p91 = por %p89, %p90
      %s92 = ssub.s32 %s16, %s23
      %p93 = scmp.eq.s32.totalorder %s92, 0
      %s95 = sadd.s32 %s94, 1
      %s96 = scalar_select %p93, %s94, %s95
      %p99 = pneg %p93
      %p100 = scmp.eq.s32.totalorder %s16, 1
      %p101 = por %p99, %p100
      %p102 = scmp.ne.s32.totalorder %s94, %s97
      %p103 = scmp.eq.s32.totalorder %s16, 0
      %p104 = por %p102, %p103
      %p105 = scmp.ne.s32.totalorder %s94, %s97
      %p106 = scmp.eq.s32.totalorder %s21, 1
      %p107 = por %p105, %p106
      %p108 = scmp.ne.s32.totalorder %s97, %s98
      %p109 = scmp.eq.s32.totalorder %s21, 0
      %p110 = por %p108, %p109
      %p111 = scmp.ne.s32.totalorder %s97, %s98
      %p112 = scmp.eq.s32.totalorder %s22, 1
      %p113 = por %p111, %p112
      %p115 = scmp.ne.s32.totalorder %s98, %s114
      %p116 = scmp.eq.s32.totalorder %s22, 0
      %p117 = por %p115, %p116
      %p118 = scmp.le.s32.totalorder 1, %s16
      %p119 = scmp.lt.s32.totalorder %s16, 3
      %p120 = pnand %p118, %p119
      %p121 = pneg %p120
      // Predicated region
      $region9: #{tpu_custom_call.1} parent=5 // pred_check
        _
      $region10: #{tpu_custom_call.1} parent=5 // pred_check_branch
        %123 = sbr.rel (%p120) target = $region12
      $region11: #{tpu_custom_call.1} parent=5 // pred_region
        %s124 = ssub.s32 %s16, 1
        // Predicated region
        $region13: #{tpu_custom_call.1} parent=11 // pred_check
          %p125 = pneg %p63
        $region14: #{tpu_custom_call.1} parent=11 // pred_check_branch
          %127 = sbr.rel (%p125) target = $region16
        $region15: #{tpu_custom_call.1} parent=11 // pred_region
          %s129 = ssub.s32 128, 128
          %130 = vsyncadd [#allocation6], %s129
          %s132 = sshll.u32 [#allocation5], 4
          %s133 = int_to_ptr.vmem [resolvable:$true] %s132
          %135 = dma.hbm_to_vmem [thread:$0]  %s1, 128, %s133, [#allocation6]
        $region16: #{tpu_custom_call.1} parent=11 // pred_fallthru
          _
        // Predicated region
        $region17: #{tpu_custom_call.1} parent=11 // pred_check
          %p136 = pneg %p84
        $region18: #{tpu_custom_call.1} parent=11 // pred_check_branch
          %138 = sbr.rel (%p136) target = $region20
        $region19: #{tpu_custom_call.1} parent=11 // pred_region
          %s140 = ssub.s32 1280, 1280
          %141 = vsyncadd [#allocation6], %s140
          %s142 = sshll.u32 [#allocation7], 4
          %s143 = int_to_ptr.vmem [resolvable:$true] %s142
          %148 = dma.hbm_to_vmem [thread:$0]  %s2, 1280, %s143, [#allocation6], 256, 256, 16
        $region20: #{tpu_custom_call.1} parent=11 // pred_fallthru
          _
      $region12: #{tpu_custom_call.1} parent=5 // pred_fallthru
        _
      %p149 = scmp.lt.s32.totalorder %s16, 2
      // Predicated region
      $region21: #{tpu_custom_call.1} parent=5 // pred_check
        %p150 = pneg %p149
      $region22: #{tpu_custom_call.1} parent=5 // pred_check_branch
        %152 = sbr.rel (%p150) target = $region24
      $region23: #{tpu_custom_call.1} parent=5 // pred_region
        // Predicated region
        $region25: #{tpu_custom_call.1} parent=23 // pred_check
          %p153 = pneg %p36
        $region26: #{tpu_custom_call.1} parent=23 // pred_check_branch
          %155 = sbr.rel (%p153) target = $region28
        $region27: #{tpu_custom_call.1} parent=23 // pred_region
          %s156 = sand.u32 %s26, 1
          %s157 = scalar_lea.sflag [#allocation3], %s156
          %s158 = sand.u32 %s26, 1
          %s159 = smul.addr %s158, 8
          %s160 = scalar_lea.vmem [#allocation2], %s159
          %s162 = ssub.s32 128, 128
          %163 = vsyncadd %s157, %s162
          %s164 = smul.addr %s16, 2
          %s165 = smul.addr %s164, 64
          %s166 = scalar_lea.hbm %s0, %s165
          %s168 = sshll.u32 %s160, 4
          %s169 = int_to_ptr.vmem [resolvable:$true] %s168
          %171 = dma.hbm_to_vmem [thread:$0]  %s166, 128, %s169, %s157
        $region28: #{tpu_custom_call.1} parent=23 // pred_fallthru
          _
      $region24: #{tpu_custom_call.1} parent=5 // pred_fallthru
        _
      %p172 = scmp.le.s32.totalorder 1, %s16
      %p173 = scmp.lt.s32.totalorder %s16, 3
      %p174 = pnand %p172, %p173
      %p175 = pneg %p174
      // Predicated region
      $region29: #{tpu_custom_call.1} parent=5 // pred_check
        _
      $region30: #{tpu_custom_call.1} parent=5 // pred_check_branch
        %177 = sbr.rel (%p174) target = $region32
      $region31: #{tpu_custom_call.1} parent=5 // pred_region
        %s178 = ssub.s32 %s16, 1
        %s179 = sand.u32 %s29, 1
        %s180 = scalar_lea.sflag [#allocation3], %s179
        %s181 = sand.u32 %s29, 1
        %s182 = smul.addr %s181, 8
        %s183 = scalar_lea.vmem [#allocation2], %s182
        // Predicated region
        $region33: #{tpu_custom_call.1} parent=31 // pred_check
          %p184 = pneg %p42
        $region34: #{tpu_custom_call.1} parent=31 // pred_check_branch
          %186 = sbr.rel (%p184) target = $region36
        $region35: #{tpu_custom_call.1} parent=31 // pred_region
          %187 = dma.done %s180, 128
        $region36: #{tpu_custom_call.1} parent=31 // pred_fallthru
          _
        // Predicated region
        $region37: #{tpu_custom_call.1} parent=31 // pred_check
          %p188 = pneg %p63
        $region38: #{tpu_custom_call.1} parent=31 // pred_check_branch
          %190 = sbr.rel (%p188) target = $region40
        $region39: #{tpu_custom_call.1} parent=31 // pred_region
          %191 = dma.done [#allocation6], 128
        $region40: #{tpu_custom_call.1} parent=31 // pred_fallthru
          _
        // Predicated region
        $region41: #{tpu_custom_call.1} parent=31 // pred_check
          %p192 = pneg %p84
        $region42: #{tpu_custom_call.1} parent=31 // pred_check_branch
          %194 = sbr.rel (%p192) target = $region44
        $region43: #{tpu_custom_call.1} parent=31 // pred_region
          %195 = dma.done [#allocation6], 1280
        $region44: #{tpu_custom_call.1} parent=31 // pred_fallthru
          _
        %s196 = sand.u32 %s29, 1
        %s197 = scalar_lea.sflag [#allocation3], %s196
        %s198 = sand.u32 %s29, 1
        %s199 = smul.addr %s198, 8
        %s200 = scalar_lea.vmem [#allocation2], %s199
        %p201 = pneg %p42
        %p202 = pneg %p39
        %p203 = pneg %p63
        %p204 = pneg %p60
        %p205 = pneg %p84
        %p206 = pneg %p81
        %p207 = pneg %p110
        %p208 = pneg %p107
        %s209 = sand.u32 %s97, 1
        %s210 = scalar_lea.sflag [#allocation4], %s209
        %s211 = sand.u32 %s97, 1
        %s212 = smul.addr %s211, 16
        %s213 = scalar_lea.vmem [#allocation8], %s212
        %v214 = vld [vmem:[#allocation5] sm:$0xff]
        %v215 = vld [vmem:[#allocation7] sm:$0xff]
        %v216 = vld [vmem:[#allocation7 + $0x8] sm:$0xff]
        %v217 = vld [vmem:[#allocation7 + $0x10] sm:$0xff]
        %v218 = vld [vmem:[#allocation7 + $0x18] sm:$0xff]
        %v219 = vld [vmem:[#allocation7 + $0x20] sm:$0xff]
        %v220 = vld [vmem:[#allocation7 + $0x28] sm:$0xff]
        %v221 = vld [vmem:[#allocation7 + $0x30] sm:$0xff]
        %v222 = vld [vmem:[#allocation7 + $0x38] sm:$0xff]
        %v223 = vld [vmem:[#allocation7 + $0x40] sm:$0xf]
        %v224 = vld [vmem:[#allocation7 + $0x48] sm:$0xf]
        %v225 = vld [vmem:[%s183] sm:$0xff]
        %v227 = vcombine.high %v225, %v225
        %229 = vrot.lane.b32.xlu0 %v225, 17
        %v230 = vpop.permute.xlu0 %229
        %231 = vrot.lane.b32.xlu0 %v227, 17
        %v232 = vpop.permute.xlu0 %231
        %v233 = vlaneseq
        %v234 = vand.u32 %v233, 127
        %vm235 = vcmp.lt.s32.totalorder %v234, 17
        %v236 = vsel %vm235, %v230, %v232
        %v237 = vsel %vm235, %v232, %v230
        %238 = vrot.lane.b32.xlu0 %v225, 16
        %v239 = vpop.permute.xlu0 %238
        %240 = vrot.lane.b32.xlu0 %v227, 16
        %v241 = vpop.permute.xlu0 %240
        %vm242 = vcmp.lt.s32.totalorder %v234, 16
        %v243 = vsel %vm242, %v239, %v241
        %v244 = vsel %vm242, %v241, %v239
        %245 = vrot.lane.b32.xlu0 %v225, 15
        %v246 = vpop.permute.xlu0 %245
        %247 = vrot.lane.b32.xlu0 %v227, 15
        %v248 = vpop.permute.xlu0 %247
        %vm249 = vcmp.lt.s32.totalorder %v234, 15
        %v250 = vsel %vm249, %v246, %v248
        %v251 = vsel %vm249, %v248, %v246
        %252 = vrot.lane.b32.xlu0 %v225, 1
        %v253 = vpop.permute.xlu0 %252
        %254 = vrot.lane.b32.xlu0 %v227, 1
        %v255 = vpop.permute.xlu0 %254
        %vm256 = vcmp.lt.s32.totalorder %v234, 1
        %v257 = vsel %vm256, %v253, %v255
        %v258 = vsel %vm256, %v255, %v253
        %259 = vrot.lane.b32.xlu0 %v225, 127
        %v260 = vpop.permute.xlu0 %259
        %261 = vrot.lane.b32.xlu0 %v227, 127
        %v262 = vpop.permute.xlu0 %261
        %vm263 = vcmp.lt.s32.totalorder %v234, 127
        %v264 = vsel %vm263, %v260, %v262
        %v265 = vsel %vm263, %v262, %v260
        %266 = vrot.lane.b32.xlu0 %v225, 113
        %v267 = vpop.permute.xlu0 %266
        %268 = vrot.lane.b32.xlu0 %v227, 113
        %v269 = vpop.permute.xlu0 %268
        %vm270 = vcmp.lt.s32.totalorder %v234, 113
        %v271 = vsel %vm270, %v267, %v269
        %v272 = vsel %vm270, %v269, %v267
        %273 = vrot.lane.b32.xlu0 %v225, 112
        %v274 = vpop.permute.xlu0 %273
        %275 = vrot.lane.b32.xlu0 %v227, 112
        %v276 = vpop.permute.xlu0 %275
        %vm277 = vcmp.lt.s32.totalorder %v234, 112
        %v278 = vsel %vm277, %v274, %v276
        %v279 = vsel %vm277, %v276, %v274
        %280 = vrot.lane.b32.xlu0 %v225, 111
        %v281 = vpop.permute.xlu0 %280
        %282 = vrot.lane.b32.xlu0 %v227, 111
        %v283 = vpop.permute.xlu0 %282
        %vm284 = vcmp.lt.s32.totalorder %v234, 111
        %v285 = vsel %vm284, %v281, %v283
        %v286 = vsel %vm284, %v283, %v281
        %v289 = vrot.slane %v244, 4
        %v290 = vrot.slane %v243, 4
        %v295 = vrot.slane %v258, 4
        %v296 = vrot.slane %v257, 4
        %v301 = vrot.slane %v264, 4
        %v302 = vrot.slane %v265, 4
        %v307 = vrot.slane %v278, 4
        %v308 = vrot.slane %v279, 4
        %vm311 = vcmask 1043456
        %v312 = vsel %vm311, %v237, %v289
        %v313 = vsel %vm311, %v236, %v290
        %v314 = vsel %vm311, %v251, %v295
        %v315 = vsel %vm311, %v250, %v296
        %v316 = vsel %vm311, %v225, %v301
        %v317 = vsel %vm311, %v227, %v302
        %v318 = vsel %vm311, %v271, %v307
        %v319 = vsel %vm311, %v272, %v308
        %v320 = vmul.f32 %v312, %v215
        %v321 = vmul.f32 %v313, %v216
        %v322 = vmul.f32 %v314, %v217
        %v323 = vmul.f32 %v315, %v218
        %v324 = vmul.f32 %v316, %v219
        %v325 = vmul.f32 %v317, %v220
        %v326 = vmul.f32 %v318, %v221
        %v327 = vmul.f32 %v319, %v222
        %v328 = vmul.f32 %v285, %v223
        %v329 = vmul.f32 %v286, %v224
        %vm330 = vcmask 293888
        %v332 = vsel %vm330, %v214, 0
        %v335 = vsel %vm311, %v328, 0
        %v338 = vsel %vm311, %v329, 0
        %340 = vmatprep.subr.mxu0 %v321
        %341 = vmatpush1.msra.mxu0 %v320
        %342 = vmatprep.subr.mxu0 %v323
        %343 = vmatpush1.msra.mxu0 %v322
        %344 = vmatprep.subr.mxu0 %v325
        %345 = vmatpush1.msra.mxu0 %v324
        %346 = vmatprep.subr.mxu0 %v327
        %347 = vmatpush1.msra.mxu0 %v326
        %348 = vmatprep.subr.mxu0 %v338
        %349 = vmatpush1.msra.mxu0 %v335
        %350 = vmatprep.subr.mxu0 0.0
        %351 = vmatpush1.msra.mxu0 0.0
        %352 = vmatprep.subr.mxu0 0.0
        %353 = vmatpush1.msra.mxu0 0.0
        %354 = vmatprep.subr.mxu0 0.0
        %355 = vmatpush1.msra.mxu0 0.0
        %356 = vmatprep.subr.mxu0 0.0
        %357 = vmatpush1.msra.mxu0 0.0
        %358 = vmatprep.subr.mxu0 0.0
        %359 = vmatpush1.msra.mxu0 0.0
        %360 = vmatprep.subr.mxu0 0.0
        %361 = vmatpush1.msra.mxu0 0.0
        %362 = vmatprep.subr.mxu0 0.0
        %363 = vmatpush1.msra.mxu0 0.0
        %364 = vmatprep.subr.mxu0 0.0
        %365 = vmatpush1.msra.mxu0 0.0
        %366 = vmatprep.subr.mxu0 0.0
        %367 = vmatpush1.msra.mxu0 0.0
        %368 = vmatprep.subr.mxu0 0.0
        %369 = vmatpush1.msra.mxu0 0.0
        %370 = vmatprep.subr.mxu0 0.0
        %371 = vmatpush1.msra.mxu0 0.0
        %372 = vmatprep.subr.mxu0 0.0
        %373 = vmatpush1.msra.mxu0 0.0
        %374 = vmatprep.subr.mxu0 0.0
        %375 = vmatpush1.msra.mxu0 0.0
        %376 = vmatprep.subr.mxu0 0.0
        %377 = vmatpush1.msra.mxu0 0.0
        %378 = vmatprep.subr.mxu0 0.0
        %379 = vmatpush1.msra.mxu0 0.0
        %380 = vmatprep.subr.mxu0 0.0
        %381 = vmatpush1.msra.mxu0 0.0
        %382 = vmatprep.subr.mxu0 0.0
        %383 = vmatpush1.msra.mxu0 0.0
        %384 = vmatprep.subr.mxu0 0.0
        %385 = vmatpush1.msra.mxu0 0.0
        %386 = vmatprep.subr.mxu0 0.0
        %387 = vmatpush1.msra.mxu0 0.0
        %388 = vmatprep.subr.mxu0 0.0
        %389 = vmatpush1.msra.mxu0 0.0
        %390 = vmatprep.subr.mxu0 0.0
        %391 = vmatpush1.msra.mxu0 0.0
        %392 = vmatprep.subr.mxu0 0.0
        %393 = vmatpush1.msra.mxu0 0.0
        %394 = vmatprep.subr.mxu0 0.0
        %395 = vmatpush1.msra.mxu0 0.0
        %396 = vmatprep.subr.mxu0 0.0
        %397 = vmatpush1.msra.mxu0 0.0
        %398 = vmatprep.subr.mxu0 0.0
        %399 = vmatpush1.msra.mxu0 0.0
        %400 = vmatprep.subr.mxu0 0.0
        %401 = vmatpush1.msra.mxu0 0.0
        %402 = vmatprep.subr.mxu0 0.0
        %403 = vmatpush1.msra.mxu0 0.0
        %404 = vmatprep.mubr.f32.mxu0 0.0
        %405 = vmatmul.mubr.f32.gmra.mrb[0].mxu0 %v332
        %v406 = vpop.f32.mrb[0].mxu0
        %v407 = vadd.f32 0.0, %v406
        %v408 = vpop.f32.mrb[0].mxu0
        %v409 = vadd.f32 0.0, %v408
        %410 = vdwg.mxu0
        %411 = vst [vmem:[%s213] sm:$0xff] %v407
        %412 = vst [vmem:[%s213 + $0x8] sm:$0xff] %v409
        %s413 = sand.u32 %s97, 1
        %s414 = scalar_lea.sflag [#allocation4], %s413
        %s415 = sand.u32 %s97, 1
        %s416 = smul.addr %s415, 16
        %s417 = scalar_lea.vmem [#allocation8], %s416
        // Predicated region
        $region45: #{tpu_custom_call.1} parent=31 // pred_check
          %p418 = pneg %p107
        $region46: #{tpu_custom_call.1} parent=31 // pred_check_branch
          %420 = sbr.rel (%p418) target = $region48
        $region47: #{tpu_custom_call.1} parent=31 // pred_region
          %s422 = ssub.s32 256, 256
          %423 = vsyncadd %s414, %s422
          %s424 = smul.addr %s21, 2
          %s425 = smul.addr %s424, 128
          %s426 = scalar_lea.hbm %s3, %s425
          %s428 = sshll.u32 %s417, 4
          %s429 = int_to_ptr.vmem [resolvable:$true] %s428
          %431 = dma.vmem_to_hbm [thread:$0]  %s429, 256, %s426, %s414
        $region48: #{tpu_custom_call.1} parent=31 // pred_fallthru
          _
      $region32: #{tpu_custom_call.1} parent=5 // pred_fallthru
        _
      %p432 = scmp.le.s32.totalorder 2, %s16
      // Predicated region
      $region49: #{tpu_custom_call.1} parent=5 // pred_check
        %p433 = pneg %p432
      $region50: #{tpu_custom_call.1} parent=5 // pred_check_branch
        %435 = sbr.rel (%p433) target = $region52
      $region51: #{tpu_custom_call.1} parent=5 // pred_region
        %s436 = ssub.s32 %s16, 2
        // Predicated region
        $region53: #{tpu_custom_call.1} parent=51 // pred_check
          %p437 = pneg %p113
        $region54: #{tpu_custom_call.1} parent=51 // pred_check_branch
          %439 = sbr.rel (%p437) target = $region56
        $region55: #{tpu_custom_call.1} parent=51 // pred_region
          %s440 = sand.u32 %s98, 1
          %s441 = scalar_lea.sflag [#allocation4], %s440
          %s442 = sand.u32 %s98, 1
          %s443 = smul.addr %s442, 16
          %s444 = scalar_lea.vmem [#allocation8], %s443
          %445 = dma.done %s441, 256
        $region56: #{tpu_custom_call.1} parent=51 // pred_fallthru
          _
      $region52: #{tpu_custom_call.1} parent=5 // pred_fallthru
        _
    $region6: #{tpu_custom_call.1} parent=1 // loop_footer
      %s20 = sadd.s32 1, %s16
    $region7: #{tpu_custom_call.1} parent=1 // loop_footer_branch
      %15 = sbr.rel target = $region3
    $region8: #{tpu_custom_call.1} parent=1 // loop_exit
      _
    %446 = vsyncpa [#allocation3], 1
    %s447 = scalar_lea.sflag [#allocation3], 1
    %448 = vsyncpa %s447, 1
    %449 = vsyncpa [#allocation6], 1
    %450 = vsyncpa [#allocation4], 1
    %s451 = scalar_lea.sflag [#allocation4], 1
    %452 = vsyncpa %s451, 1

</llo_original>
